<compile_context>
chip_gen: v7x
topology: tpu7x:2x2x1
jax: 0.10.0
libtpu: 0.0.40
codegen_flags: <defaults>
</compile_context>

<pallas_src>
import functools

import jax
import jax.numpy as jnp
from jax.experimental import pallas as pl
from jax.experimental.pallas import tpu as pltpu


def _shared_mlp_kernel(x_ref, w_ref, b_ref, o_ref, *, apply_relu, use_mxu,
                       precision):
    # x_ref: (Bb, C_in, TS)  channel-major, spatial on the lane axis.
    # w_ref: (TN, C_in)   b_ref: (TN, 1)   o_ref: (Bb, TN, TS)
    w = w_ref[...]
    bias = b_ref[...].astype(jnp.float32)          # (TN, 1), broadcasts on lanes
    bb = x_ref.shape[0]
    for i in range(bb):                            # static unroll over batch block
        xi = x_ref[i]                              # (C_in, TS)
        if use_mxu:
            acc = jnp.dot(w, xi, preferred_element_type=jnp.float32,
                          precision=precision) + bias
        else:
            # Tiny-channel regime (C_in <= 8, TN <= 32): unrolled VPU
            # broadcast-multiply-adds in exact f32; skips MXU fill/drain.
            acc = bias
            for c in range(w.shape[1]):            # static unroll over C_in
                acc = acc + (w[:, c:c + 1].astype(jnp.float32) *
                             xi[c:c + 1, :].astype(jnp.float32))
        if apply_relu:
            acc = jnp.maximum(acc, 0.0)
        o_ref[i] = acc.astype(o_ref.dtype)


def _largest_divisor_at_most(n, cap):
    cap = max(1, min(n, cap))
    for d in range(cap, 0, -1):
        if n % d == 0:
            return d
    return 1


def shared_mlp_forward(x, weight, bias, *, apply_relu=False, io_dtype=None,
                       spatial_tile=None):
    """SharedMLP forward: 1x1 Conv2d (+ optional ReLU), NCHW in / NCHW out.

    Args:
      x:      (B, C_in, N, K)  (PyTorch NCHW layout).
      weight: (C_out, C_in, 1, 1)  (PyTorch Conv2d weight shape).
      bias:   (C_out,).
      apply_relu: fuse a ReLU (for activation_fn=nn.ReLU()).
      io_dtype: optional I/O dtype (e.g. jnp.bfloat16) to halve HBM traffic;
                accumulation stays in f32. Default: x.dtype.
      spatial_tile: optional override of the spatial (N*K) tile size.
    Returns:
      (B, C_out, N, K) in io_dtype (or x.dtype).
    """
    B, C_in, N, K = x.shape
    C_out = weight.shape[0]
    S = N * K

    io_dtype = jnp.dtype(io_dtype) if io_dtype is not None else jnp.dtype(x.dtype)
    itemsize = io_dtype.itemsize

    # Free reshapes only -- no transposes, no padding copies.
    x3 = x.reshape(B, C_in, S).astype(io_dtype)
    w2d = weight.reshape(C_out, C_in).astype(io_dtype)
    b2d = bias.reshape(C_out, 1).astype(jnp.float32)

    # Output-channel tile: split only when C_out is large.
    tn = C_out if C_out <= 256 else 256

    # Generation-aware VMEM budget (v7x has 64 MiB/TC vs 128 MiB on v5e/v6e).
    try:
        vmem_cap = int(pltpu.get_tpu_info().vmem_capacity_bytes)
    except Exception:  # be conservative if the query is unavailable
        vmem_cap = 64 * 1024 * 1024
    if vmem_cap <= 64 * 1024 * 1024:          # v7x-class
        budget = 16 * 1024 * 1024
        vmem_limit_cap = 28 * 1024 * 1024
    else:                                     # v5e / v6e
        budget = 32 * 1024 * 1024
        vmem_limit_cap = 64 * 1024 * 1024

    # Bytes per spatial lane per batch row: double-buffered x + out I/O tiles
    # plus ~2 f32 compute temporaries of the output-tile width.
    per_lane = 2 * (C_in + tn) * itemsize + 2 * tn * 4

    if spatial_tile is None:
        ts_cap = max(128, budget // per_lane)
        if S <= ts_cap:
            ts = S                                    # full spatial dim is legal
            bb = _largest_divisor_at_most(B, min(8, ts_cap // max(S, 1)))
        else:
            ts = (ts_cap // 128) * 128                # lane-dense tile
            bb = 1
    else:
        ts = spatial_tile
        bb = 1

    # Keep >= 2 grid steps on a parallel axis so both v7x TensorCores get work.
    if pl.cdiv(B, bb) * pl.cdiv(S, ts) * pl.cdiv(C_out, tn) == 1:
        if B >= 2:
            bb = _largest_divisor_at_most(B, max(1, B // 2))
        elif S >= 256 and spatial_tile is None:
            ts = max(128, ((S // 2 + 127) // 128) * 128)

    grid = (pl.cdiv(B, bb), pl.cdiv(S, ts), pl.cdiv(C_out, tn))

    vmem_need = bb * ts * per_lane + 2 * (tn * C_in + tn) * 4
    vmem_limit = int(min(max(2 * vmem_need, 16 * 1024 * 1024), vmem_limit_cap))

    cost = pl.CostEstimate(
        flops=2 * B * S * C_in * C_out,
        transcendentals=0,
        bytes_accessed=int(itemsize * (B * S * C_in + B * S * C_out)
                           + 4 * (C_out * C_in + C_out)),
    )

    # Tiny-channel layers: exact-f32 VPU path. Everything else: MXU with f32
    # accumulation; HIGHEST precision for f32 inputs to keep accuracy tight.
    use_mxu = not (C_in <= 8 and tn <= 32)
    precision = (jax.lax.Precision.HIGHEST if io_dtype == jnp.float32
                 else jax.lax.Precision.DEFAULT)

    out3 = pl.pallas_call(
        functools.partial(_shared_mlp_kernel, apply_relu=apply_relu,
                          use_mxu=use_mxu, precision=precision),
        out_shape=jax.ShapeDtypeStruct((B, C_out, S), io_dtype),
        grid_spec=pltpu.PrefetchScalarGridSpec(
            num_scalar_prefetch=0,
            grid=grid,
            in_specs=[
                # x tile (Bb, C_in, ts): depends only on (b, s); with the
                # C_out-tile axis innermost it stays resident in VMEM across n.
                pl.BlockSpec((bb, C_in, ts), lambda b, s, n: (b, 0, s)),
                # Weight / bias tiles depend only on n (tiny, cheap to refetch).
                pl.BlockSpec((tn, C_in), lambda b, s, n: (n, 0)),
                pl.BlockSpec((tn, 1), lambda b, s, n: (n, 0)),
            ],
            out_specs=pl.BlockSpec((bb, tn, ts), lambda b, s, n: (b, n, s)),
        ),
        compiler_params=pltpu.CompilerParams(
            dimension_semantics=("parallel", "parallel", "arbitrary"),
            vmem_limit_bytes=vmem_limit,
        ),
        cost_estimate=cost,
    )(x3, w2d, b2d)

    return out3.reshape(B, C_out, N, K)   # free reshape back to NCHW


def shared_mlp_reference(x, weight, bias, *, apply_relu=False):
    # Pure-JAX reference of the PyTorch forward (1x1 conv, stride 1).
    w2d = weight.reshape(weight.shape[0], weight.shape[1])  # (C_out, C_in)
    out = jnp.einsum("bcnk,oc->bonk", x, w2d) + bias[None, :, None, None]
    if apply_relu:
        out = jnp.maximum(out, 0.0)
    return out


if __name__ == "__main__":
    # SharedMLP(in_channels=4, out_channels=8, kernel_size=1), bn=False, act=None
    B, C_in, N, K = 2, 4, 16, 16
    C_out = 8

    key = jax.random.PRNGKey(0)
    kx, kw, kb = jax.random.split(key, 3)
    x = jax.random.normal(kx, (B, C_in, N, K), dtype=jnp.float32)
    # Deterministic synthetic parameters (Conv2d weight shape (C_out, C_in, 1, 1)).
    weight = jax.random.normal(kw, (C_out, C_in, 1, 1), dtype=jnp.float32) * 0.1
    bias = jax.random.normal(kb, (C_out,), dtype=jnp.float32) * 0.1
    # TODO(synk): BatchNorm2d (bn=True) training-mode batch statistics not
    # implemented; module defaults are bn=False, activation_fn=None.

    out = shared_mlp_forward(x, weight, bias, apply_relu=False)
    out = jax.block_until_ready(out)

    ref = shared_mlp_reference(x, weight, bias, apply_relu=False)
    assert out.shape == (B, C_out, N, K)
    assert jnp.allclose(out, ref, atol=1e-5, rtol=1e-5), "mismatch vs reference"

    print("KERNEL_OK")
</pallas_src>

<mosaic_0001>
module attributes {stable_mosaic.version = 11 : i64} {
  func.func @_shared_mlp_kernel(%arg0: i32, %arg1: i32, %arg2: i32, %arg3: memref<1x4x256xf32, #tpu.memory_space<vmem>>, %arg4: memref<8x4xf32, #tpu.memory_space<vmem>>, %arg5: memref<8x1xf32, #tpu.memory_space<vmem>>, %arg6: memref<1x8x256xf32, #tpu.memory_space<vmem>>) attributes {dimension_semantics = [#tpu.dimension_semantics<parallel>, #tpu.dimension_semantics<parallel>, #tpu.dimension_semantics<arbitrary>], iteration_bounds = array<i64: 2, 1, 1>, scalar_prefetch = 0 : i64, scratch_operands = 0 : i64, tpu.core_type = #tpu.core_type<tc>, window_params = [{transform_indices = @transform_0, window_bounds = array<i64: 1, 4, 256>}, {transform_indices = @transform_1, window_bounds = array<i64: 8, 4>}, {transform_indices = @transform_2, window_bounds = array<i64: 8, 1>}, {transform_indices = @transform_3, window_bounds = array<i64: 1, 8, 256>}]} {
    %c0 = arith.constant 0 : index
    %c0_0 = arith.constant 0 : index
    %0 = vector.load %arg4[%c0, %c0_0] : memref<8x4xf32, #tpu.memory_space<vmem>>, vector<8x4xf32>
    %c0_1 = arith.constant 0 : index
    %c0_2 = arith.constant 0 : index
    %1 = vector.load %arg5[%c0_1, %c0_2] : memref<8x1xf32, #tpu.memory_space<vmem>>, vector<8x1xf32>
    %c0_3 = arith.constant 0 : index
    %c0_4 = arith.constant 0 : index
    %c0_5 = arith.constant 0 : index
    %2 = vector.load %arg3[%c0_3, %c0_4, %c0_5] : memref<1x4x256xf32, #tpu.memory_space<vmem>>, vector<1x4x256xf32>
    %3 = vector.shape_cast %2 : vector<1x4x256xf32> to vector<4x256xf32>
    %4 = vector.extract_strided_slice %0 {offsets = [0, 0], sizes = [8, 1], strides = [1, 1]} : vector<8x4xf32> to vector<8x1xf32>
    %5 = vector.extract_strided_slice %3 {offsets = [0, 0], sizes = [1, 256], strides = [1, 1]} : vector<4x256xf32> to vector<1x256xf32>
    %6 = vector.broadcast %4 : vector<8x1xf32> to vector<8x256xf32>
    %7 = vector.broadcast %5 : vector<1x256xf32> to vector<8x256xf32>
    %8 = arith.mulf %6, %7 : vector<8x256xf32>
    %9 = vector.broadcast %1 : vector<8x1xf32> to vector<8x256xf32>
    %10 = arith.addf %9, %8 : vector<8x256xf32>
    %11 = vector.extract_strided_slice %0 {offsets = [0, 1], sizes = [8, 1], strides = [1, 1]} : vector<8x4xf32> to vector<8x1xf32>
    %12 = vector.extract_strided_slice %3 {offsets = [1, 0], sizes = [1, 256], strides = [1, 1]} : vector<4x256xf32> to vector<1x256xf32>
    %13 = vector.broadcast %11 : vector<8x1xf32> to vector<8x256xf32>
    %14 = vector.broadcast %12 : vector<1x256xf32> to vector<8x256xf32>
    %15 = arith.mulf %13, %14 : vector<8x256xf32>
    %16 = arith.addf %10, %15 : vector<8x256xf32>
    %17 = vector.extract_strided_slice %0 {offsets = [0, 2], sizes = [8, 1], strides = [1, 1]} : vector<8x4xf32> to vector<8x1xf32>
    %18 = vector.extract_strided_slice %3 {offsets = [2, 0], sizes = [1, 256], strides = [1, 1]} : vector<4x256xf32> to vector<1x256xf32>
    %19 = vector.broadcast %17 : vector<8x1xf32> to vector<8x256xf32>
    %20 = vector.broadcast %18 : vector<1x256xf32> to vector<8x256xf32>
    %21 = arith.mulf %19, %20 : vector<8x256xf32>
    %22 = arith.addf %16, %21 : vector<8x256xf32>
    %23 = vector.extract_strided_slice %0 {offsets = [0, 3], sizes = [8, 1], strides = [1, 1]} : vector<8x4xf32> to vector<8x1xf32>
    %24 = vector.extract_strided_slice %3 {offsets = [3, 0], sizes = [1, 256], strides = [1, 1]} : vector<4x256xf32> to vector<1x256xf32>
    %25 = vector.broadcast %23 : vector<8x1xf32> to vector<8x256xf32>
    %26 = vector.broadcast %24 : vector<1x256xf32> to vector<8x256xf32>
    %27 = arith.mulf %25, %26 : vector<8x256xf32>
    %28 = arith.addf %22, %27 : vector<8x256xf32>
    %c0_6 = arith.constant 0 : index
    %c0_7 = arith.constant 0 : index
    %c0_8 = arith.constant 0 : index
    %29 = vector.load %arg6[%c0_6, %c0_7, %c0_8] : memref<1x8x256xf32, #tpu.memory_space<vmem>>, vector<1x8x256xf32>
    %30 = vector.shape_cast %29 : vector<1x8x256xf32> to vector<8x256xf32>
    %31 = vector.shape_cast %28 : vector<8x256xf32> to vector<1x8x256xf32>
    tpu.vector_store %arg6[%c0_6, %c0_7, %c0_8], %31 {strides = array<i32>} : memref<1x8x256xf32, #tpu.memory_space<vmem>>, vector<1x8x256xf32>,
    return
  }
  func.func @transform_0(%arg0: i32, %arg1: i32, %arg2: i32) -> (i32, i32, i32) {
    %c0_i32 = arith.constant 0 : i32
    %c0_i32_0 = arith.constant 0 : i32
    return %arg0, %c0_i32, %arg1 : i32, i32, i32
  }
  func.func @transform_1(%arg0: i32, %arg1: i32, %arg2: i32) -> (i32, i32) {
    %c0_i32 = arith.constant 0 : i32
    %c0_i32_0 = arith.constant 0 : i32
    return %arg2, %c0_i32 : i32, i32
  }
  func.func @transform_2(%arg0: i32, %arg1: i32, %arg2: i32) -> (i32, i32) {
    %c0_i32 = arith.constant 0 : i32
    %c0_i32_0 = arith.constant 0 : i32
    return %arg2, %c0_i32 : i32, i32
  }
  func.func @transform_3(%arg0: i32, %arg1: i32, %arg2: i32) -> (i32, i32, i32) {
    %c0_i32 = arith.constant 0 : i32
    return %arg0, %arg2, %arg1 : i32, i32, i32
  }
}

</mosaic_0001>

<llo_original>
// kernel: tpu_custom_call.1
$region0: #{tpu_custom_call.1}
  #allocation0 [shape = 'u32[]', space=smem, size = 0x4, offset = 0x4, fixed_abs, tag = 'smem constant byte address 0x4 - core index']
  #allocation1 [shape = 'u32[144,128]{1,0:T(1,128)}', space=vmem, size = 0x12000, scoped, tag = 'internal scratch']
  %s0 = inlined_call_operand.vmem [shape: f32[2,4,256], index: 0, kind: input, shape index: {}]
  %s1 = inlined_call_operand.vmem [shape: f32[8,4], index: 1, kind: input, shape index: {}]
  %s2 = inlined_call_operand.vmem [shape: f32[8,1], index: 2, kind: input, shape index: {}]
  %s3 = inlined_call_operand.hbm [shape: f32[2,8,256], index: 3, kind: output, shape index: {}]
  %s4 = sld [smem:[#allocation0]]
  $region45: #{tpu_custom_call.1} parent=0
    _
  %s6 = ssub.s32 1, %s4
  %s7 = scalar_select 0, %s6, %s4
  $region1: #{tpu_custom_call.1} parent=0
    #allocation2 [shape = 'u8[16384]{0}', space=vmem, size = 0x4000, scoped, tag = 'output window, operand 0']
    #allocation3 [shape = 's32[2]{0}', space=sflag, size = 0x8, scoped, tag = 'scoped memory for tpu_custom_call.1']
    %8 = vsyncpa [#allocation3], 0
    %s9 = scalar_lea.sflag [#allocation3], 1
    %10 = vsyncpa %s9, 0
    loop: start=0, step=1, limit=4
    $region2: #{tpu_custom_call.1} parent=1 // loop_pre_header
      _
    $region3: #{tpu_custom_call.1} parent=1 // loop_header
      %s12 = sphi 0, %s16
      %p13 = scmp.ge.s32.totalorder %s12, 4
      %s19 = sphi 0, %s38
      %s20 = sphi 0, %s34
      %s21 = sphi 0, %s30
      %s22 = sphi 0, %s19
      %s23 = sphi 0, %s20
      %s24 = sphi 0, %s21
      %s25 = sphi 0, %s22
      %s26 = sphi 0, %s23
      %s27 = sphi 0, %s24
      %s43 = sphi 0, %s45
      %s46 = sphi 0, %s43
      %s47 = sphi 0, %s46
      %s63 = sphi 0, %s47
      %s69 = sphi 0, %s71
      %s72 = sphi 0, %s69
      %s73 = sphi 0, %s72
      %s89 = sphi 0, %s73
      %s95 = sphi 0, %s97
      %s98 = sphi 0, %s95
      %s99 = sphi 0, %s98
      %s115 = sphi 0, %s99
      %s125 = sphi 0, %s127
      %s128 = sphi 0, %s125
      %s129 = sphi 0, %s128
      %s145 = sphi 0, %s129
    $region4: #{tpu_custom_call.1} parent=1 // loop_header_branch
      %15 = sbr.rel (%p13) target = $region8
    $region5: #{tpu_custom_call.1} parent=1 // loop_body
      %s17 = ssub.s32 %s12, 1
      %s18 = ssub.s32 %s12, 2
      %s28 = sadd.s32 1, %s21
      %p29 = scmp.ge.s32.totalorder %s28, 1
      %s30 = scalar_select %p29, 0, %s28
      %s31 = sadd.s32 1, %s20
      %s32 = scalar_select %p29, %s31, %s20
      %p33 = scmp.ge.s32.totalorder %s32, 1
      %s34 = scalar_select %p33, 0, %s32
      %s35 = sadd.s32 1, %s19
      %s36 = scalar_select %p33, %s35, %s19
      %p37 = scmp.ge.s32.totalorder %s36, 2
      %s38 = scalar_select %p37, 0, %s36
      %s39 = ssub.s32 %s19, %s38
      %s40 = ssub.s32 %s20, %s34
      %s41 = sor.u32 %s39, %s40
      %p42 = scmp.eq.s32.totalorder %s41, 0
      %s44 = sadd.s32 %s43, 1
      %s45 = scalar_select %p42, %s43, %s44
      %p48 = pneg %p42
      %p49 = scmp.eq.s32.totalorder %s12, 1
      %p50 = por %p48, %p49
      %p51 = scmp.ne.s32.totalorder %s43, %s46
      %p52 = scmp.eq.s32.totalorder %s12, 0
      %p53 = por %p51, %p52
      %p54 = scmp.ne.s32.totalorder %s43, %s46
      %p55 = scmp.eq.s32.totalorder %s17, 1
      %p56 = por %p54, %p55
      %p57 = scmp.ne.s32.totalorder %s46, %s47
      %p58 = scmp.eq.s32.totalorder %s17, 0
      %p59 = por %p57, %p58
      %p60 = scmp.ne.s32.totalorder %s46, %s47
      %p61 = scmp.eq.s32.totalorder %s18, 1
      %p62 = por %p60, %p61
      %p64 = scmp.ne.s32.totalorder %s47, %s63
      %p65 = scmp.eq.s32.totalorder %s18, 0
      %p66 = por %p64, %p65
      %s67 = ssub.s32 %s21, %s30
      %p68 = scmp.eq.s32.totalorder %s67, 0
      %s70 = sadd.s32 %s69, 1
      %s71 = scalar_select %p68, %s69, %s70
      %p74 = pneg %p68
      %p75 = scmp.eq.s32.totalorder %s12, 1
      %p76 = por %p74, %p75
      %p77 = scmp.ne.s32.totalorder %s69, %s72
      %p78 = scmp.eq.s32.totalorder %s12, 0
      %p79 = por %p77, %p78
      %p80 = scmp.ne.s32.totalorder %s69, %s72
      %p81 = scmp.eq.s32.totalorder %s17, 1
      %p82 = por %p80, %p81
      %p83 = scmp.ne.s32.totalorder %s72, %s73
      %p84 = scmp.eq.s32.totalorder %s17, 0
      %p85 = por %p83, %p84
      %p86 = scmp.ne.s32.totalorder %s72, %s73
      %p87 = scmp.eq.s32.totalorder %s18, 1
      %p88 = por %p86, %p87
      %p90 = scmp.ne.s32.totalorder %s73, %s89
      %p91 = scmp.eq.s32.totalorder %s18, 0
      %p92 = por %p90, %p91
      %s93 = ssub.s32 %s21, %s30
      %p94 = scmp.eq.s32.totalorder %s93, 0
      %s96 = sadd.s32 %s95, 1
      %s97 = scalar_select %p94, %s95, %s96
      %p100 = pneg %p94
      %p101 = scmp.eq.s32.totalorder %s12, 1
      %p102 = por %p100, %p101
      %p103 = scmp.ne.s32.totalorder %s95, %s98
      %p104 = scmp.eq.s32.totalorder %s12, 0
      %p105 = por %p103, %p104
      %p106 = scmp.ne.s32.totalorder %s95, %s98
      %p107 = scmp.eq.s32.totalorder %s17, 1
      %p108 = por %p106, %p107
      %p109 = scmp.ne.s32.totalorder %s98, %s99
      %p110 = scmp.eq.s32.totalorder %s17, 0
      %p111 = por %p109, %p110
      %p112 = scmp.ne.s32.totalorder %s98, %s99
      %p113 = scmp.eq.s32.totalorder %s18, 1
      %p114 = por %p112, %p113
      %p116 = scmp.ne.s32.totalorder %s99, %s115
      %p117 = scmp.eq.s32.totalorder %s18, 0
      %p118 = por %p116, %p117
      %s119 = ssub.s32 %s19, %s38
      %s120 = ssub.s32 %s21, %s30
      %s121 = sor.u32 %s119, %s120
      %s122 = ssub.s32 %s20, %s34
      %s123 = sor.u32 %s121, %s122
      %p124 = scmp.eq.s32.totalorder %s123, 0
      %s126 = sadd.s32 %s125, 1
      %s127 = scalar_select %p124, %s125, %s126
      %p130 = pneg %p124
      %p131 = scmp.eq.s32.totalorder %s12, 1
      %p132 = por %p130, %p131
      %p133 = scmp.ne.s32.totalorder %s125, %s128
      %p134 = scmp.eq.s32.totalorder %s12, 0
      %p135 = por %p133, %p134
      %p136 = scmp.ne.s32.totalorder %s125, %s128
      %p137 = scmp.eq.s32.totalorder %s17, 1
      %p138 = por %p136, %p137
      %p139 = scmp.ne.s32.totalorder %s128, %s129
      %p140 = scmp.eq.s32.totalorder %s17, 0
      %p141 = por %p139, %p140
      %p142 = scmp.ne.s32.totalorder %s128, %s129
      %p143 = scmp.eq.s32.totalorder %s18, 1
      %p144 = por %p142, %p143
      %p146 = scmp.ne.s32.totalorder %s129, %s145
      %p147 = scmp.eq.s32.totalorder %s18, 0
      %p148 = por %p146, %p147
      %p149 = scmp.le.s32.totalorder 1, %s12
      %p150 = scmp.lt.s32.totalorder %s12, 3
      %p151 = pnand %p149, %p150
      %p152 = pneg %p151
      // Predicated region
      $region9: #{tpu_custom_call.1} parent=5 // pred_check
        _
      $region10: #{tpu_custom_call.1} parent=5 // pred_check_branch
        %154 = sbr.rel (%p151) target = $region12
      $region11: #{tpu_custom_call.1} parent=5 // pred_region
        %s155 = ssub.s32 %s12, 1
        // Predicated region
        $region13: #{tpu_custom_call.1} parent=11 // pred_check
          %p156 = pneg %p85
        $region14: #{tpu_custom_call.1} parent=11 // pred_check_branch
          %158 = sbr.rel (%p156) target = $region16
        $region15: #{tpu_custom_call.1} parent=11 // pred_region
          %p159 = scmp.lt.s32.totalorder %s24, 0
          %s160 = scalar_select %p159, %s24, 0
          %s161 = smul.addr %s160, 8
          %s162 = scalar_lea.vmem %s1, %s161
        $region16: #{tpu_custom_call.1} parent=11 // pred_fallthru
          _
        // Predicated region
        $region17: #{tpu_custom_call.1} parent=11 // pred_check
          %p163 = pneg %p111
        $region18: #{tpu_custom_call.1} parent=11 // pred_check_branch
          %165 = sbr.rel (%p163) target = $region20
        $region19: #{tpu_custom_call.1} parent=11 // pred_region
          %p166 = scmp.lt.s32.totalorder %s24, 0
          %s167 = scalar_select %p166, %s24, 0
          %s168 = smul.addr %s167, 8
          %s169 = scalar_lea.vmem %s2, %s168
        $region20: #{tpu_custom_call.1} parent=11 // pred_fallthru
          _
      $region12: #{tpu_custom_call.1} parent=5 // pred_fallthru
        _
      %p170 = scmp.lt.s32.totalorder %s12, 2
      // Predicated region
      $region21: #{tpu_custom_call.1} parent=5 // pred_check
        %p171 = pneg %p170
      $region22: #{tpu_custom_call.1} parent=5 // pred_check_branch
        %173 = sbr.rel (%p171) target = $region24
      $region23: #{tpu_custom_call.1} parent=5 // pred_region
        // Predicated region
        $region25: #{tpu_custom_call.1} parent=23 // pred_check
          %p174 = pneg %p53
        $region26: #{tpu_custom_call.1} parent=23 // pred_check_branch
          %176 = sbr.rel (%p174) target = $region28
        $region27: #{tpu_custom_call.1} parent=23 // pred_region
          %s177 = smul.u32 2, %s20
          %p178 = scmp.lt.s32.totalorder %s19, 1
          %s179 = scalar_select %p178, %s19, 1
          %p180 = scmp.lt.s32.totalorder %s177, 1
          %s181 = scalar_select %p180, %s177, 1
          %s182 = smul.addr %s179, 2
          %s183 = sadd.s32 %s181, %s182
          %s184 = smul.addr %s183, 4
          %s185 = scalar_lea.vmem %s0, %s184
          %s186 = smul.u32 2, %s20
        $region28: #{tpu_custom_call.1} parent=23 // pred_fallthru
          _
      $region24: #{tpu_custom_call.1} parent=5 // pred_fallthru
        _
      %p187 = scmp.le.s32.totalorder 1, %s12
      %p188 = scmp.lt.s32.totalorder %s12, 3
      %p189 = pnand %p187, %p188
      %p190 = pneg %p189
      // Predicated region
      $region29: #{tpu_custom_call.1} parent=5 // pred_check
        _
      $region30: #{tpu_custom_call.1} parent=5 // pred_check_branch
        %192 = sbr.rel (%p189) target = $region32
      $region31: #{tpu_custom_call.1} parent=5 // pred_region
        %s193 = ssub.s32 %s12, 1
        %s194 = smul.u32 2, %s23
        %p195 = scmp.lt.s32.totalorder %s22, 1
        %s196 = scalar_select %p195, %s22, 1
        %p197 = scmp.lt.s32.totalorder %s194, 1
        %s198 = scalar_select %p197, %s194, 1
        %s199 = smul.addr %s196, 2
        %s200 = sadd.s32 %s198, %s199
        %s201 = smul.addr %s200, 4
        %s202 = scalar_lea.vmem %s0, %s201
        %p203 = pneg %p59
        %p204 = pneg %p56
        %p205 = scmp.lt.s32.totalorder %s24, 0
        %s206 = scalar_select %p205, %s24, 0
        %s207 = smul.addr %s206, 8
        %s208 = scalar_lea.vmem %s1, %s207
        %p209 = pneg %p85
        %p210 = pneg %p82
        %p211 = scmp.lt.s32.totalorder %s24, 0
        %s212 = scalar_select %p211, %s24, 0
        %s213 = smul.addr %s212, 8
        %s214 = scalar_lea.vmem %s2, %s213
        %p215 = pneg %p111
        %p216 = pneg %p108
        %p217 = pneg %p141
        %p218 = pneg %p138
        %s219 = sand.u32 %s128, 1
        %s220 = scalar_lea.sflag [#allocation3], %s219
        %s221 = sand.u32 %s128, 1
        %s222 = smul.addr %s221, 16
        %s223 = scalar_lea.vmem [#allocation2], %s222
        %s224 = smul.u32 2, %s23
        %p225 = scmp.lt.s32.totalorder %s22, 1
        %s226 = scalar_select %p225, %s22, 1
        %p227 = scmp.lt.s32.totalorder %s224, 1
        %s228 = scalar_select %p227, %s224, 1
        %s229 = smul.addr %s226, 2
        %s230 = sadd.s32 %s228, %s229
        %s231 = smul.addr %s230, 4
        %s232 = scalar_lea.vmem %s0, %s231
        %s233 = smul.u32 2, %s23
        %p234 = scmp.lt.s32.totalorder %s24, 0
        %s235 = scalar_select %p234, %s24, 0
        %s236 = smul.addr %s235, 8
        %s237 = scalar_lea.vmem %s1, %s236
        %p238 = scmp.lt.s32.totalorder %s24, 0
        %s239 = scalar_select %p238, %s24, 0
        %s240 = smul.addr %s239, 8
        %s241 = scalar_lea.vmem %s2, %s240
        %s242 = smul.u32 2, %s23
        %v243 = vld [vmem:[%s237] sm:$0xff]
        %v244 = vld [vmem:[%s241] sm:$0xff]
        %v245 = vld [vmem:[%s232] sm:$0xff]
        %247 = vset.pattern.permute.xlu0 0
        %248 = vperm.xlu0 %247, %v243
        %v249 = vpop.permute.xlu0 %248
        %v252 = vlaneseq
        %v253 = vshrl.u32 %v252, 7
        %v254 = vsub.s32 0, %v253
        %v255 = vrot.slane %v245, %v254
        %v256 = vlaneseq
        %v257 = vshrl.u32 %v256, 7
        %v258 = vsub.s32 4, %v257
        %v259 = vrot.slane %v245, %v258
        %v262 = vlaneseq
        %v263 = vshrl.u32 %v262, 7
        %v264 = vsub.s32 0, %v263
        %v265 = vrot.slane %v255, %v264
        %v266 = vlaneseq
        %v267 = vshrl.u32 %v266, 7
        %v268 = vsub.s32 0, %v267
        %v269 = vrot.slane %v259, %v268
        %v270 = vmul.f32 %v249, %v265
        %v271 = vmul.f32 %v249, %v269
        %273 = vset.pattern.permute.xlu0 0
        %274 = vperm.xlu0 %273, %v244
        %v275 = vpop.permute.xlu0 %274
        %v277 = vadd.f32 %v275, %v270
        %v278 = vadd.f32 %v275, %v271
        %279 = vset.pattern.permute.xlu0 1
        %280 = vperm.xlu0 %279, %v243
        %v281 = vpop.permute.xlu0 %280
        %v283 = vlaneseq
        %v284 = vshrl.u32 %v283, 7
        %v285 = vsub.s32 1, %v284
        %v286 = vrot.slane %v245, %v285
        %v287 = vlaneseq
        %v288 = vshrl.u32 %v287, 7
        %v289 = vsub.s32 5, %v288
        %v290 = vrot.slane %v245, %v289
        %v293 = vlaneseq
        %v294 = vshrl.u32 %v293, 7
        %v295 = vsub.s32 1, %v294
        %v296 = vrot.slane %v286, %v295
        %v297 = vlaneseq
        %v298 = vshrl.u32 %v297, 7
        %v299 = vsub.s32 1, %v298
        %v300 = vrot.slane %v290, %v299
        %v301 = vmul.f32 %v281, %v296
        %v302 = vmul.f32 %v281, %v300
        %v303 = vadd.f32 %v277, %v301
        %v304 = vadd.f32 %v278, %v302
        %305 = vset.pattern.permute.xlu0 2
        %306 = vperm.xlu0 %305, %v243
        %v307 = vpop.permute.xlu0 %306
        %v309 = vlaneseq
        %v310 = vshrl.u32 %v309, 7
        %v311 = vsub.s32 2, %v310
        %v312 = vrot.slane %v245, %v311
        %v313 = vlaneseq
        %v314 = vshrl.u32 %v313, 7
        %v315 = vsub.s32 6, %v314
        %v316 = vrot.slane %v245, %v315
        %v319 = vlaneseq
        %v320 = vshrl.u32 %v319, 7
        %v321 = vsub.s32 2, %v320
        %v322 = vrot.slane %v312, %v321
        %v323 = vlaneseq
        %v324 = vshrl.u32 %v323, 7
        %v325 = vsub.s32 2, %v324
        %v326 = vrot.slane %v316, %v325
        %v327 = vmul.f32 %v307, %v322
        %v328 = vmul.f32 %v307, %v326
        %v329 = vadd.f32 %v303, %v327
        %v330 = vadd.f32 %v304, %v328
        %331 = vset.pattern.permute.xlu0 3
        %332 = vperm.xlu0 %331, %v243
        %v333 = vpop.permute.xlu0 %332
        %v335 = vlaneseq
        %v336 = vshrl.u32 %v335, 7
        %v337 = vsub.s32 3, %v336
        %v338 = vrot.slane %v245, %v337
        %v339 = vlaneseq
        %v340 = vshrl.u32 %v339, 7
        %v341 = vsub.s32 7, %v340
        %v342 = vrot.slane %v245, %v341
        %v345 = vlaneseq
        %v346 = vshrl.u32 %v345, 7
        %v347 = vsub.s32 3, %v346
        %v348 = vrot.slane %v338, %v347
        %v349 = vlaneseq
        %v350 = vshrl.u32 %v349, 7
        %v351 = vsub.s32 3, %v350
        %v352 = vrot.slane %v342, %v351
        %v353 = vmul.f32 %v333, %v348
        %v354 = vmul.f32 %v333, %v352
        %v355 = vadd.f32 %v329, %v353
        %v356 = vadd.f32 %v330, %v354
        %357 = vst [vmem:[%s223] sm:$0xff] %v355
        %358 = vst [vmem:[%s223 + $0x8] sm:$0xff] %v356
        %s359 = sand.u32 %s128, 1
        %s360 = scalar_lea.sflag [#allocation3], %s359
        %s361 = sand.u32 %s128, 1
        %s362 = smul.addr %s361, 16
        %s363 = scalar_lea.vmem [#allocation2], %s362
        // Predicated region
        $region33: #{tpu_custom_call.1} parent=31 // pred_check
          %p364 = pneg %p138
        $region34: #{tpu_custom_call.1} parent=31 // pred_check_branch
          %366 = sbr.rel (%p364) target = $region36
        $region35: #{tpu_custom_call.1} parent=31 // pred_region
          %s367 = smul.u32 2, %s23
          %s369 = ssub.s32 256, 256
          %370 = vsyncadd %s360, %s369
          %s371 = smul.addr %s24, 2
          %s372 = sadd.s32 %s367, %s371
          %s373 = smul.addr %s22, 2
          %s374 = sadd.s32 %s372, %s373
          %s375 = smul.addr %s374, 128
          %s376 = scalar_lea.hbm %s3, %s375
          %s378 = sshll.u32 %s363, 4
          %s379 = int_to_ptr.vmem [resolvable:$true] %s378
          %381 = dma.vmem_to_hbm [thread:$0]  %s379, 256, %s376, %s360
        $region36: #{tpu_custom_call.1} parent=31 // pred_fallthru
          _
      $region32: #{tpu_custom_call.1} parent=5 // pred_fallthru
        _
      %p382 = scmp.le.s32.totalorder 2, %s12
      // Predicated region
      $region37: #{tpu_custom_call.1} parent=5 // pred_check
        %p383 = pneg %p382
      $region38: #{tpu_custom_call.1} parent=5 // pred_check_branch
        %385 = sbr.rel (%p383) target = $region40
      $region39: #{tpu_custom_call.1} parent=5 // pred_region
        %s386 = ssub.s32 %s12, 2
        // Predicated region
        $region41: #{tpu_custom_call.1} parent=39 // pred_check
          %p387 = pneg %p144
        $region42: #{tpu_custom_call.1} parent=39 // pred_check_branch
          %389 = sbr.rel (%p387) target = $region44
        $region43: #{tpu_custom_call.1} parent=39 // pred_region
          %s390 = sand.u32 %s129, 1
          %s391 = scalar_lea.sflag [#allocation3], %s390
          %s392 = sand.u32 %s129, 1
          %s393 = smul.addr %s392, 16
          %s394 = scalar_lea.vmem [#allocation2], %s393
          %395 = dma.done %s391, 256
        $region44: #{tpu_custom_call.1} parent=39 // pred_fallthru
          _
      $region40: #{tpu_custom_call.1} parent=5 // pred_fallthru
        _
    $region6: #{tpu_custom_call.1} parent=1 // loop_footer
      %s16 = sadd.s32 1, %s12
    $region7: #{tpu_custom_call.1} parent=1 // loop_footer_branch
      %11 = sbr.rel target = $region3
    $region8: #{tpu_custom_call.1} parent=1 // loop_exit
      _
    %396 = vsyncpa [#allocation3], 1
    %s397 = scalar_lea.sflag [#allocation3], 1
    %398 = vsyncpa %s397, 1

</llo_original>
